<compile_context>
chip_gen: v7x
topology: tpu7x:2x2x1
jax: 0.10.0
libtpu: 0.0.40
codegen_flags: <defaults>
</compile_context>

<pallas_src>
import jax
import jax.numpy as jnp
from jax.experimental import pallas as pl
from jax.experimental.pallas import tpu as pltpu


def _round_up(x, m):
    return ((x + m - 1) // m) * m


def _mlp_softmax_kernel(x_ref, w1_ref, b1_ref, w2_ref, b2_ref, w3_ref, b3_ref,
                        o_ref):
    n_out = o_ref.shape[-1]                              # 9 real action lanes
    x = x_ref[...].astype(jnp.bfloat16)                  # in-kernel VPU cast
    # fc1 + tanh  (bf16 MXU matmul, f32 accumulate; tanh on EUP)
    h1 = jnp.tanh(
        jnp.dot(x, w1_ref[...], preferred_element_type=jnp.float32)
        + b1_ref[...])
    # fc2 + tanh
    h2 = jnp.tanh(
        jnp.dot(h1.astype(jnp.bfloat16), w2_ref[...],
                preferred_element_type=jnp.float32)
        + b2_ref[...])
    # fc3, lane-padded to 128 outputs; pad columns carry a -1e30 f32 bias so
    # they vanish under the softmax below.
    logits = (jnp.dot(h2.astype(jnp.bfloat16), w3_ref[...],
                      preferred_element_type=jnp.float32)
              + b3_ref[...])
    # numerically-stable softmax over the 128 lanes (pad cols -> exp() == 0)
    m = jnp.max(logits, axis=-1, keepdims=True)
    e = jnp.exp(logits - m)
    denom = jnp.sum(e, axis=-1, keepdims=True)
    probs = e * pl.reciprocal(denom, approx=True)        # EUP slot, ~free
    # store only the 9 real columns (lane-narrow but tiny writeback)
    o_ref[...] = probs[:, :n_out]


def prepare_params(params, *, n_out_pad=128):
    """One-time weight prep: bf16 casts + fc3 lane-pad.  Do NOT call per step."""
    w1, b1, w2, b2, w3, b3 = params
    n_out = w3.shape[1]
    w3p = jnp.zeros((w3.shape[0], n_out_pad), w3.dtype).at[:, :n_out].set(w3)
    b3p = jnp.full((1, n_out_pad), -1e30, jnp.float32).at[:, :n_out].set(
        b3.astype(jnp.float32))
    return (w1.astype(jnp.bfloat16), b1.astype(jnp.float32),
            w2.astype(jnp.bfloat16), b2.astype(jnp.float32),
            w3p.astype(jnp.bfloat16), b3p, n_out)


def policy_gradient_forward(state, prepared, *, tm=2048):
    """state: [B, input_dim*8] float32.  Returns [B, 9] softmax probs."""
    w1b, b1, w2b, b2, w3b, b3p, n_out = prepared
    B, F = state.shape

    # Batch tile: multiple of 16, capped so (a) it never wildly exceeds B and
    # (b) the grid has >=2 steps when possible (v7x has 2 TensorCores).
    TM = min(tm, _round_up(pl.cdiv(B, 2), 16), _round_up(B, 8))
    TM = max(TM, 8)
    grid = (pl.cdiv(B, TM),)

    # Advisory cost estimate for the surrounding XLA schedule.
    h1_, h2_, o_pad = w1b.shape[1], w2b.shape[1], w3b.shape[1]
    flops = 2 * B * (F * h1_ + h1_ * h2_ + h2_ * o_pad)
    transcendentals = B * (h1_ + h2_ + o_pad)
    weight_bytes = sum(int(a.size) * a.dtype.itemsize
                       for a in (w1b, b1, w2b, b2, w3b, b3p))
    bytes_accessed = B * (F * 4 + n_out * 4) + weight_bytes

    const = lambda i: (0, 0)     # weights/biases: same (VMEM-resident) block
    out = pl.pallas_call(
        _mlp_softmax_kernel,
        out_shape=jax.ShapeDtypeStruct((B, n_out), jnp.float32),
        grid=grid,
        in_specs=[
            pl.BlockSpec((TM, F), lambda i: (i, 0)),
            pl.BlockSpec(w1b.shape, const),
            pl.BlockSpec(b1.shape, const),
            pl.BlockSpec(w2b.shape, const),
            pl.BlockSpec(b2.shape, const),
            pl.BlockSpec(w3b.shape, const),
            pl.BlockSpec(b3p.shape, const),
        ],
        out_specs=pl.BlockSpec((TM, n_out), lambda i: (i, 0)),
        compiler_params=pltpu.CompilerParams(
            dimension_semantics=("parallel",),
            vmem_limit_bytes=32 * 1024 * 1024),
        cost_estimate=pl.CostEstimate(flops=flops,
                                      transcendentals=transcendentals,
                                      bytes_accessed=bytes_accessed),
    )(state, w1b, b1, w2b, b2, w3b, b3p)
    return out


def init_params(key, input_dim):
    """Deterministic init mimicking nn.Linear's U(-1/sqrt(fan_in), +1/sqrt(fan_in)).
    Weights stored as [in_features, out_features]; biases as [1, out_features]."""
    dims = [(input_dim * 8, 64), (64, 32), (32, 9)]
    params = []
    for fi, fo in dims:
        kw, kb, key = jax.random.split(key, 3)
        bound = 1.0 / (fi ** 0.5)
        w = jax.random.uniform(kw, (fi, fo), jnp.float32, -bound, bound)
        b = jax.random.uniform(kb, (1, fo), jnp.float32, -bound, bound)
        params += [w, b]
    return tuple(params)


def reference_forward_f32(state, params):
    w1, b1, w2, b2, w3, b3 = params
    h = jnp.tanh(state @ w1 + b1)
    h = jnp.tanh(h @ w2 + b2)
    return jax.nn.softmax(h @ w3 + b3, axis=-1)


def reference_forward_bf16(state, params):
    """Precision-matched reference (bf16 matmul inputs, f32 accumulation)."""
    w1, b1, w2, b2, w3, b3 = params
    f = jnp.float32
    bf = jnp.bfloat16
    h = jnp.tanh(jnp.dot(state.astype(bf), w1.astype(bf),
                         preferred_element_type=f) + b1)
    h = jnp.tanh(jnp.dot(h.astype(bf), w2.astype(bf),
                         preferred_element_type=f) + b2)
    logits = jnp.dot(h.astype(bf), w3.astype(bf),
                     preferred_element_type=f) + b3
    return jax.nn.softmax(logits, axis=-1)


if __name__ == "__main__":
    key = jax.random.PRNGKey(0)
    input_dim = 4            # -> fc1 input features = input_dim * 8 = 32
    batch = 8

    k_x, k_p = jax.random.split(key)
    state = jax.random.normal(k_x, (batch, input_dim * 8), jnp.float32)
    params = init_params(k_p, input_dim)
    prepared = prepare_params(params)      # one-time weight prep

    out = policy_gradient_forward(state, prepared)
    out = jax.block_until_ready(out)

    assert out.shape == (batch, 9)
    # Sanity vs full-f32 PyTorch-equivalent reference (loose: bf16 matmuls).
    ref32 = reference_forward_f32(state, params)
    assert jnp.allclose(out, ref32, atol=2e-2, rtol=0), "mismatch vs f32 ref"
    # Tight check vs precision-matched reference (only approx-recip differs).
    refbf = reference_forward_bf16(state, params)
    assert jnp.allclose(out, refbf, atol=1e-2, rtol=0), "mismatch vs bf16 ref"
    # Rows should sum to ~1 (approx reciprocal allows small slack).
    assert jnp.allclose(jnp.sum(out, axis=-1), 1.0, atol=1e-2)

    print("KERNEL_OK")
</pallas_src>

<mosaic_0001>
module attributes {stable_mosaic.version = 11 : i64} {
  func.func @_mlp_softmax_kernel(%arg0: i32, %arg1: memref<8x32xf32, #tpu.memory_space<vmem>>, %arg2: memref<32x64xbf16, #tpu.memory_space<vmem>>, %arg3: memref<1x64xf32, #tpu.memory_space<vmem>>, %arg4: memref<64x32xbf16, #tpu.memory_space<vmem>>, %arg5: memref<1x32xf32, #tpu.memory_space<vmem>>, %arg6: memref<32x128xbf16, #tpu.memory_space<vmem>>, %arg7: memref<1x128xf32, #tpu.memory_space<vmem>>, %arg8: memref<8x9xf32, #tpu.memory_space<vmem>>) attributes {dimension_semantics = [#tpu.dimension_semantics<parallel>], iteration_bounds = array<i64: 1>, scalar_prefetch = 0 : i64, scratch_operands = 0 : i64, tpu.core_type = #tpu.core_type<tc>, window_params = [{transform_indices = @transform_0, window_bounds = array<i64: 8, 32>}, {pipeline_mode = #tpu.pipeline_mode<synchronous>, transform_indices = @transform_1, window_bounds = array<i64: 32, 64>}, {pipeline_mode = #tpu.pipeline_mode<synchronous>, transform_indices = @transform_2, window_bounds = array<i64: 1, 64>}, {pipeline_mode = #tpu.pipeline_mode<synchronous>, transform_indices = @transform_3, window_bounds = array<i64: 64, 32>}, {pipeline_mode = #tpu.pipeline_mode<synchronous>, transform_indices = @transform_4, window_bounds = array<i64: 1, 32>}, {pipeline_mode = #tpu.pipeline_mode<synchronous>, transform_indices = @transform_5, window_bounds = array<i64: 32, 128>}, {pipeline_mode = #tpu.pipeline_mode<synchronous>, transform_indices = @transform_6, window_bounds = array<i64: 1, 128>}, {transform_indices = @transform_7, window_bounds = array<i64: 8, 9>}]} {
    %c0 = arith.constant 0 : index
    %c0_0 = arith.constant 0 : index
    %0 = vector.load %arg1[%c0, %c0_0] : memref<8x32xf32, #tpu.memory_space<vmem>>, vector<8x32xf32>
    %1 = arith.truncf %0 : vector<8x32xf32> to vector<8x32xbf16>
    %c0_1 = arith.constant 0 : index
    %c0_2 = arith.constant 0 : index
    %2 = vector.load %arg2[%c0_1, %c0_2] : memref<32x64xbf16, #tpu.memory_space<vmem>>, vector<32x64xbf16>
    %cst = arith.constant dense<0.000000e+00> : vector<8x64xf32>
    %3 = tpu.matmul %1, %2, %cst {dimension_numbers = #tpu.dot_dimension_numbers<[1], [0], [0], [1], [0, 0, 1, 1], [], []>} : vector<8x32xbf16>, vector<32x64xbf16>, vector<8x64xf32> -> vector<8x64xf32>
    %c0_3 = arith.constant 0 : index
    %c0_4 = arith.constant 0 : index
    %4 = vector.load %arg3[%c0_3, %c0_4] : memref<1x64xf32, #tpu.memory_space<vmem>>, vector<1x64xf32>
    %5 = vector.broadcast %4 : vector<1x64xf32> to vector<8x64xf32>
    %6 = arith.addf %3, %5 : vector<8x64xf32>
    %7 = math.tanh %6 : vector<8x64xf32>
    %8 = arith.truncf %7 : vector<8x64xf32> to vector<8x64xbf16>
    %c0_5 = arith.constant 0 : index
    %c0_6 = arith.constant 0 : index
    %9 = vector.load %arg4[%c0_5, %c0_6] : memref<64x32xbf16, #tpu.memory_space<vmem>>, vector<64x32xbf16>
    %cst_7 = arith.constant dense<0.000000e+00> : vector<8x32xf32>
    %10 = tpu.matmul %8, %9, %cst_7 {dimension_numbers = #tpu.dot_dimension_numbers<[1], [0], [0], [1], [0, 0, 1, 1], [], []>} : vector<8x64xbf16>, vector<64x32xbf16>, vector<8x32xf32> -> vector<8x32xf32>
    %c0_8 = arith.constant 0 : index
    %c0_9 = arith.constant 0 : index
    %11 = vector.load %arg5[%c0_8, %c0_9] : memref<1x32xf32, #tpu.memory_space<vmem>>, vector<1x32xf32>
    %12 = vector.broadcast %11 : vector<1x32xf32> to vector<8x32xf32>
    %13 = arith.addf %10, %12 : vector<8x32xf32>
    %14 = math.tanh %13 : vector<8x32xf32>
    %15 = arith.truncf %14 : vector<8x32xf32> to vector<8x32xbf16>
    %c0_10 = arith.constant 0 : index
    %c0_11 = arith.constant 0 : index
    %16 = vector.load %arg6[%c0_10, %c0_11] : memref<32x128xbf16, #tpu.memory_space<vmem>>, vector<32x128xbf16>
    %cst_12 = arith.constant dense<0.000000e+00> : vector<8x128xf32>
    %17 = tpu.matmul %15, %16, %cst_12 {dimension_numbers = #tpu.dot_dimension_numbers<[1], [0], [0], [1], [0, 0, 1, 1], [], []>} : vector<8x32xbf16>, vector<32x128xbf16>, vector<8x128xf32> -> vector<8x128xf32>
    %c0_13 = arith.constant 0 : index
    %c0_14 = arith.constant 0 : index
    %18 = vector.load %arg7[%c0_13, %c0_14] : memref<1x128xf32, #tpu.memory_space<vmem>>, vector<1x128xf32>
    %19 = vector.broadcast %18 : vector<1x128xf32> to vector<8x128xf32>
    %20 = arith.addf %17, %19 : vector<8x128xf32>
    %cst_15 = arith.constant dense<0xFF800000> : vector<8xf32>
    %21 = vector.multi_reduction <maximumf>, %20, %cst_15 [1] : vector<8x128xf32> to vector<8xf32>
    %22 = vector.shape_cast %21 : vector<8xf32> to vector<8x1xf32>
    %23 = vector.broadcast %22 : vector<8x1xf32> to vector<8x128xf32>
    %24 = arith.subf %20, %23 : vector<8x128xf32>
    %25 = math.exp %24 : vector<8x128xf32>
    %cst_16 = arith.constant dense<0.000000e+00> : vector<8xf32>
    %26 = vector.multi_reduction <add>, %25, %cst_16 [1] : vector<8x128xf32> to vector<8xf32>
    %27 = vector.shape_cast %26 : vector<8xf32> to vector<8x1xf32>
    %28 = tpu.reciprocal %27 {approx = true} : vector<8x1xf32> -> vector<8x1xf32>
    %29 = vector.broadcast %28 : vector<8x1xf32> to vector<8x128xf32>
    %30 = arith.mulf %25, %29 : vector<8x128xf32>
    %31 = vector.extract_strided_slice %30 {offsets = [0, 0], sizes = [8, 9], strides = [1, 1]} : vector<8x128xf32> to vector<8x9xf32>
    %c0_17 = arith.constant 0 : index
    %c0_18 = arith.constant 0 : index
    %32 = vector.load %arg8[%c0_17, %c0_18] : memref<8x9xf32, #tpu.memory_space<vmem>>, vector<8x9xf32>
    tpu.vector_store %arg8[%c0_17, %c0_18], %31 {strides = array<i32>} : memref<8x9xf32, #tpu.memory_space<vmem>>, vector<8x9xf32>,
    return
  }
  func.func @transform_0(%arg0: i32) -> (i32, i32) {
    %c0_i32 = arith.constant 0 : i32
    %c0_i32_0 = arith.constant 0 : i32
    return %arg0, %c0_i32 : i32, i32
  }
  func.func @transform_1(%arg0: i32) -> (i32, i32) {
    %c0_i32 = arith.constant 0 : i32
    %c0_i32_0 = arith.constant 0 : i32
    %c0_i32_1 = arith.constant 0 : i32
    return %c0_i32, %c0_i32_0 : i32, i32
  }
  func.func @transform_2(%arg0: i32) -> (i32, i32) {
    %c0_i32 = arith.constant 0 : i32
    %c0_i32_0 = arith.constant 0 : i32
    %c0_i32_1 = arith.constant 0 : i32
    return %c0_i32, %c0_i32_0 : i32, i32
  }
  func.func @transform_3(%arg0: i32) -> (i32, i32) {
    %c0_i32 = arith.constant 0 : i32
    %c0_i32_0 = arith.constant 0 : i32
    %c0_i32_1 = arith.constant 0 : i32
    return %c0_i32, %c0_i32_0 : i32, i32
  }
  func.func @transform_4(%arg0: i32) -> (i32, i32) {
    %c0_i32 = arith.constant 0 : i32
    %c0_i32_0 = arith.constant 0 : i32
    %c0_i32_1 = arith.constant 0 : i32
    return %c0_i32, %c0_i32_0 : i32, i32
  }
  func.func @transform_5(%arg0: i32) -> (i32, i32) {
    %c0_i32 = arith.constant 0 : i32
    %c0_i32_0 = arith.constant 0 : i32
    %c0_i32_1 = arith.constant 0 : i32
    return %c0_i32, %c0_i32_0 : i32, i32
  }
  func.func @transform_6(%arg0: i32) -> (i32, i32) {
    %c0_i32 = arith.constant 0 : i32
    %c0_i32_0 = arith.constant 0 : i32
    %c0_i32_1 = arith.constant 0 : i32
    return %c0_i32, %c0_i32_0 : i32, i32
  }
  func.func @transform_7(%arg0: i32) -> (i32, i32) {
    %c0_i32 = arith.constant 0 : i32
    %c0_i32_0 = arith.constant 0 : i32
    return %arg0, %c0_i32 : i32, i32
  }
}

</mosaic_0001>

<llo_original>
// kernel: tpu_custom_call.1
$region0: #{tpu_custom_call.1}
  #allocation0 [shape = 'u32[]', space=smem, size = 0x4, offset = 0x4, fixed_abs, tag = 'smem constant byte address 0x4 - core index']
  #allocation1 [shape = 'u32[144,128]{1,0:T(1,128)}', space=vmem, size = 0x12000, scoped, tag = 'internal scratch']
  %s0 = inlined_call_operand.vmem [shape: f32[8,32], index: 0, kind: input, shape index: {}]
  %s1 = inlined_call_operand.vmem [shape: bf16[32,64], index: 1, kind: input, shape index: {}]
  %s2 = inlined_call_operand.vmem [shape: f32[1,64], index: 2, kind: input, shape index: {}]
  %s3 = inlined_call_operand.vmem [shape: bf16[64,32], index: 3, kind: input, shape index: {}]
  %s4 = inlined_call_operand.vmem [shape: f32[1,32], index: 4, kind: input, shape index: {}]
  %s5 = inlined_call_operand.vmem [shape: bf16[32,128], index: 5, kind: input, shape index: {}]
  %s6 = inlined_call_operand.vmem [shape: f32[1,128], index: 6, kind: input, shape index: {}]
  %s7 = inlined_call_operand.hbm [shape: f32[8,9], index: 7, kind: output, shape index: {}]
  %s8 = sld [smem:[#allocation0]]
  $region38: #{tpu_custom_call.1} parent=0
    _
  %s10 = ssub.s32 1, %s8
  %s11 = scalar_select 0, %s10, %s8
  $region1: #{tpu_custom_call.1} parent=0
    #allocation2 [shape = 'u8[4096]{0}', space=vmem, size = 0x1000, scoped, tag = 'output window, operand 0, single buffered']
    #allocation3 [shape = 's32[1]{0}', space=sflag, size = 0x4, scoped, tag = 'scoped memory for tpu_custom_call.1']
    %12 = vsyncpa [#allocation3], 0
    // Predicated region
    $region2: #{tpu_custom_call.1} parent=1 // pred_check
      _
    $region3: #{tpu_custom_call.1} parent=1 // pred_check_branch
      %14 = sbr.rel (0) target = $region5
    $region4: #{tpu_custom_call.1} parent=1 // pred_region
      _
    $region5: #{tpu_custom_call.1} parent=1 // pred_fallthru
      _
    // Predicated region
    $region6: #{tpu_custom_call.1} parent=1 // pred_check
      _
    $region7: #{tpu_custom_call.1} parent=1 // pred_check_branch
      %16 = sbr.rel (0) target = $region9
    $region8: #{tpu_custom_call.1} parent=1 // pred_region
      _
    $region9: #{tpu_custom_call.1} parent=1 // pred_fallthru
      _
    // Predicated region
    $region10: #{tpu_custom_call.1} parent=1 // pred_check
      _
    $region11: #{tpu_custom_call.1} parent=1 // pred_check_branch
      %18 = sbr.rel (0) target = $region13
    $region12: #{tpu_custom_call.1} parent=1 // pred_region
      _
    $region13: #{tpu_custom_call.1} parent=1 // pred_fallthru
      _
    // Predicated region
    $region14: #{tpu_custom_call.1} parent=1 // pred_check
      _
    $region15: #{tpu_custom_call.1} parent=1 // pred_check_branch
      %20 = sbr.rel (0) target = $region17
    $region16: #{tpu_custom_call.1} parent=1 // pred_region
      _
    $region17: #{tpu_custom_call.1} parent=1 // pred_fallthru
      _
    // Predicated region
    $region18: #{tpu_custom_call.1} parent=1 // pred_check
      _
    $region19: #{tpu_custom_call.1} parent=1 // pred_check_branch
      %22 = sbr.rel (0) target = $region21
    $region20: #{tpu_custom_call.1} parent=1 // pred_region
      _
    $region21: #{tpu_custom_call.1} parent=1 // pred_fallthru
      _
    // Predicated region
    $region22: #{tpu_custom_call.1} parent=1 // pred_check
      _
    $region23: #{tpu_custom_call.1} parent=1 // pred_check_branch
      %24 = sbr.rel (0) target = $region25
    $region24: #{tpu_custom_call.1} parent=1 // pred_region
      _
    $region25: #{tpu_custom_call.1} parent=1 // pred_fallthru
      _
    // Predicated region
    $region26: #{tpu_custom_call.1} parent=1 // pred_check
      _
    $region27: #{tpu_custom_call.1} parent=1 // pred_check_branch
      %26 = sbr.rel (0) target = $region29
    $region28: #{tpu_custom_call.1} parent=1 // pred_region
      _
    $region29: #{tpu_custom_call.1} parent=1 // pred_fallthru
      _
    %v28 = vld [vmem:[%s0] sm:$0xff]
    %v29 = vpack.c.bf16 %v28, %v28
    %v30 = vld [vmem:[%s1] sm:$0xf]
    %v31 = vld [vmem:[%s1 + $0x4] sm:$0xf]
    %v32 = vld [vmem:[%s1 + $0x8] sm:$0xf]
    %v33 = vld [vmem:[%s1 + $0xc] sm:$0xf]
    %v34 = vld [vmem:[%s2] sm:$0x1]
    %v36 = vlaneseq
    %v37 = vshrl.u32 %v36, 7
    %v38 = vsub.s32 0, %v37
    %v39 = vrot.slane %v34, %v38
    %v45 = vunpack.c.l.b16 %v30
    %v46 = vunpack.c.l.b16 %v31
    %v47 = vunpack.c.l.b16 %v32
    %v48 = vunpack.c.l.b16 %v33
    %v49 = vpack.c.b16 %v46, %v45
    %v50 = vpack.c.b16 %v48, %v47
    %vm53 = vcmask 261120
    %v55 = vsel %vm53, %v29, 0
    %57 = vmatprep.subr.bf16.mxu0 0
    %58 = vmatpush1.bf16.msra.mxu0 %v49
    %59 = vmatprep.subr.bf16.mxu0 0
    %60 = vmatpush1.bf16.msra.mxu0 %v50
    %61 = vmatprep.subr.bf16.mxu0 0
    %62 = vmatpush1.bf16.msra.mxu0 0
    %63 = vmatprep.subr.bf16.mxu0 0
    %64 = vmatpush1.bf16.msra.mxu0 0
    %65 = vmatprep.subr.bf16.mxu0 0
    %66 = vmatpush1.bf16.msra.mxu0 0
    %67 = vmatprep.subr.bf16.mxu0 0
    %68 = vmatpush1.bf16.msra.mxu0 0
    %69 = vmatprep.subr.bf16.mxu0 0
    %70 = vmatpush1.bf16.msra.mxu0 0
    %71 = vmatprep.subr.bf16.mxu0 0
    %72 = vmatpush1.bf16.msra.mxu0 0
    %73 = vmatprep.subr.bf16.mxu0 0
    %74 = vmatpush1.bf16.msra.mxu0 0
    %75 = vmatprep.subr.bf16.mxu0 0
    %76 = vmatpush1.bf16.msra.mxu0 0
    %77 = vmatprep.subr.bf16.mxu0 0
    %78 = vmatpush1.bf16.msra.mxu0 0
    %79 = vmatprep.subr.bf16.mxu0 0
    %80 = vmatpush1.bf16.msra.mxu0 0
    %81 = vmatprep.subr.bf16.mxu0 0
    %82 = vmatpush1.bf16.msra.mxu0 0
    %83 = vmatprep.subr.bf16.mxu0 0
    %84 = vmatpush1.bf16.msra.mxu0 0
    %85 = vmatprep.subr.bf16.mxu0 0
    %86 = vmatpush1.bf16.msra.mxu0 0
    %87 = vmatprep.subr.bf16.mxu0 0
    %88 = vmatpush1.bf16.msra.mxu0 0
    %89 = vmatprep.mubr.bf16.mxu0 0
    %90 = vmatmul.mubr.bf16.gmra.mrb[0].mxu0 %v55
    %v91 = vpop.f32.mrb[0].mxu0
    %v92 = vadd.f32 %v39, %v91
    %v93 = vpop.f32.mrb[0].mxu0
    %v94 = vpop.f32.mrb[0].mxu0
    %v95 = vpop.f32.mrb[0].mxu0
    %96 = vdwg.mxu0
    %v97 = vtanh.pop %v92
    %v98 = vpack.c.bf16 %v97, %v97
    %v99 = vld [vmem:[%s3] sm:$0xf]
    %v100 = vld [vmem:[%s3 + $0x4] sm:$0xf]
    %v101 = vld [vmem:[%s3 + $0x8] sm:$0xf]
    %v102 = vld [vmem:[%s3 + $0xc] sm:$0xf]
    %v103 = vld [vmem:[%s3 + $0x10] sm:$0xf]
    %v104 = vld [vmem:[%s3 + $0x14] sm:$0xf]
    %v105 = vld [vmem:[%s3 + $0x18] sm:$0xf]
    %v106 = vld [vmem:[%s3 + $0x1c] sm:$0xf]
    %v107 = vld [vmem:[%s4] sm:$0x1]
    %v109 = vlaneseq
    %v110 = vshrl.u32 %v109, 7
    %v111 = vsub.s32 0, %v110
    %v112 = vrot.slane %v107, %v111
    %v122 = vunpack.c.l.b16 %v99
    %v123 = vunpack.c.l.b16 %v100
    %v124 = vunpack.c.l.b16 %v101
    %v125 = vunpack.c.l.b16 %v102
    %v126 = vunpack.c.l.b16 %v103
    %v127 = vunpack.c.l.b16 %v104
    %v128 = vunpack.c.l.b16 %v105
    %v129 = vunpack.c.l.b16 %v106
    %v130 = vpack.c.b16 %v123, %v122
    %v131 = vpack.c.b16 %v125, %v124
    %v132 = vpack.c.b16 %v127, %v126
    %v133 = vpack.c.b16 %v129, %v128
    %vm138 = vcmask 523264
    %v140 = vsel %vm138, %v98, 0
    %142 = vmatprep.subr.bf16.mxu0 0
    %143 = vmatpush1.bf16.msra.mxu0 %v130
    %144 = vmatprep.subr.bf16.mxu0 0
    %145 = vmatpush1.bf16.msra.mxu0 %v131
    %146 = vmatprep.subr.bf16.mxu0 0
    %147 = vmatpush1.bf16.msra.mxu0 %v132
    %148 = vmatprep.subr.bf16.mxu0 0
    %149 = vmatpush1.bf16.msra.mxu0 %v133
    %150 = vmatprep.subr.bf16.mxu0 0
    %151 = vmatpush1.bf16.msra.mxu0 0
    %152 = vmatprep.subr.bf16.mxu0 0
    %153 = vmatpush1.bf16.msra.mxu0 0
    %154 = vmatprep.subr.bf16.mxu0 0
    %155 = vmatpush1.bf16.msra.mxu0 0
    %156 = vmatprep.subr.bf16.mxu0 0
    %157 = vmatpush1.bf16.msra.mxu0 0
    %158 = vmatprep.subr.bf16.mxu0 0
    %159 = vmatpush1.bf16.msra.mxu0 0
    %160 = vmatprep.subr.bf16.mxu0 0
    %161 = vmatpush1.bf16.msra.mxu0 0
    %162 = vmatprep.subr.bf16.mxu0 0
    %163 = vmatpush1.bf16.msra.mxu0 0
    %164 = vmatprep.subr.bf16.mxu0 0
    %165 = vmatpush1.bf16.msra.mxu0 0
    %166 = vmatprep.subr.bf16.mxu0 0
    %167 = vmatpush1.bf16.msra.mxu0 0
    %168 = vmatprep.subr.bf16.mxu0 0
    %169 = vmatpush1.bf16.msra.mxu0 0
    %170 = vmatprep.subr.bf16.mxu0 0
    %171 = vmatpush1.bf16.msra.mxu0 0
    %172 = vmatprep.subr.bf16.mxu0 0
    %173 = vmatpush1.bf16.msra.mxu0 0
    %174 = vmatprep.mubr.bf16.mxu0 0
    %175 = vmatmul.mubr.bf16.gmra.mrb[0].mxu0 %v140
    %v176 = vpop.f32.mrb[0].mxu0
    %v177 = vadd.f32 %v112, %v176
    %v178 = vpop.f32.mrb[0].mxu0
    %v179 = vpop.f32.mrb[0].mxu0
    %v180 = vpop.f32.mrb[0].mxu0
    %181 = vdwg.mxu0
    %v182 = vtanh.pop %v177
    %v183 = vpack.c.bf16 %v182, %v182
    %v184 = vld [vmem:[%s5] sm:$0xf]
    %v185 = vld [vmem:[%s5 + $0x4] sm:$0xf]
    %v186 = vld [vmem:[%s5 + $0x8] sm:$0xf]
    %v187 = vld [vmem:[%s5 + $0xc] sm:$0xf]
    %v188 = vld [vmem:[%s6] sm:$0x1]
    %v190 = vlaneseq
    %v191 = vshrl.u32 %v190, 7
    %v192 = vsub.s32 0, %v191
    %v193 = vrot.slane %v188, %v192
    %v199 = vunpack.c.l.b16 %v184
    %v200 = vunpack.c.l.b16 %v185
    %v201 = vunpack.c.l.b16 %v186
    %v202 = vunpack.c.l.b16 %v187
    %v203 = vpack.c.b16 %v200, %v199
    %v204 = vpack.c.b16 %v202, %v201
    %v208 = vsel %vm53, %v183, 0
    %210 = vmatprep.subr.bf16.mxu0 0
    %211 = vmatpush1.bf16.msra.mxu0 %v203
    %212 = vmatprep.subr.bf16.mxu0 0
    %213 = vmatpush1.bf16.msra.mxu0 %v204
    %214 = vmatprep.subr.bf16.mxu0 0
    %215 = vmatpush1.bf16.msra.mxu0 0
    %216 = vmatprep.subr.bf16.mxu0 0
    %217 = vmatpush1.bf16.msra.mxu0 0
    %218 = vmatprep.subr.bf16.mxu0 0
    %219 = vmatpush1.bf16.msra.mxu0 0
    %220 = vmatprep.subr.bf16.mxu0 0
    %221 = vmatpush1.bf16.msra.mxu0 0
    %222 = vmatprep.subr.bf16.mxu0 0
    %223 = vmatpush1.bf16.msra.mxu0 0
    %224 = vmatprep.subr.bf16.mxu0 0
    %225 = vmatpush1.bf16.msra.mxu0 0
    %226 = vmatprep.subr.bf16.mxu0 0
    %227 = vmatpush1.bf16.msra.mxu0 0
    %228 = vmatprep.subr.bf16.mxu0 0
    %229 = vmatpush1.bf16.msra.mxu0 0
    %230 = vmatprep.subr.bf16.mxu0 0
    %231 = vmatpush1.bf16.msra.mxu0 0
    %232 = vmatprep.subr.bf16.mxu0 0
    %233 = vmatpush1.bf16.msra.mxu0 0
    %234 = vmatprep.subr.bf16.mxu0 0
    %235 = vmatpush1.bf16.msra.mxu0 0
    %236 = vmatprep.subr.bf16.mxu0 0
    %237 = vmatpush1.bf16.msra.mxu0 0
    %238 = vmatprep.subr.bf16.mxu0 0
    %239 = vmatpush1.bf16.msra.mxu0 0
    %240 = vmatprep.subr.bf16.mxu0 0
    %241 = vmatpush1.bf16.msra.mxu0 0
    %242 = vmatprep.mubr.bf16.mxu0 0
    %243 = vmatmul.mubr.bf16.gmra.mrb[0].mxu0 %v208
    %v244 = vpop.f32.mrb[0].mxu0
    %v245 = vadd.f32 %v193, %v244
    %v246 = vpop.f32.mrb[0].mxu0
    %v247 = vpop.f32.mrb[0].mxu0
    %v248 = vpop.f32.mrb[0].mxu0
    %249 = vdwg.mxu0
    %250 = vmax.xlane.f32.xlu0 %v245
    %v251 = vpop.xlane.xlu0 %250
    %v252 = vsub.f32 %v245, %v251
    %v253 = vmul.f32 %v252, 1.442695
    %v254 = vpow.pop %v253
    %255 = vadd.xlane.f32.xlu0 %v254
    %v256 = vpop.xlane.xlu0 %255
    %v257 = vrcp.pop %v256
    %v258 = vmul.f32 %v254, %v257
    %vm259 = vcmask 72704
    %260 = vst.msk [vmem:[#allocation2] sm:$0xff] %vm259, %v258
    // Predicated region
    $region30: #{tpu_custom_call.1} parent=1 // pred_check
      _
    $region31: #{tpu_custom_call.1} parent=1 // pred_check_branch
      %262 = sbr.rel (0) target = $region33
    $region32: #{tpu_custom_call.1} parent=1 // pred_region
      %s264 = ssub.s32 128, 128
      %265 = vsyncadd [#allocation3], %s264
      %s267 = sshll.u32 [#allocation2], 4
      %s268 = int_to_ptr.vmem [resolvable:$true] %s267
      %270 = dma.vmem_to_hbm [thread:$0]  %s268, 128, %s7, [#allocation3]
    $region33: #{tpu_custom_call.1} parent=1 // pred_fallthru
      _
    // Predicated region
    $region34: #{tpu_custom_call.1} parent=1 // pred_check
      _
    $region35: #{tpu_custom_call.1} parent=1 // pred_check_branch
      %272 = sbr.rel (0) target = $region37
    $region36: #{tpu_custom_call.1} parent=1 // pred_region
      %273 = dma.done [#allocation3], 128
    $region37: #{tpu_custom_call.1} parent=1 // pred_fallthru
      _
    %274 = vsyncpa [#allocation3], 1

</llo_original>
